<compile_context>
chip_gen: v6e
topology: v6e:2x2x1
jax: 0.10.0
libtpu: 0.0.40
codegen_flags: <defaults>
</compile_context>

<pallas_src>
import functools

import jax
import jax.numpy as jnp
from jax.experimental import pallas as pl
from jax.experimental.pallas import tpu as pltpu


def _make_noise_injection_kernel(c_blk, num_c_blocks):
    def kernel(img_ref, noise_ref, w_ref, o_ref):
        # img_ref:   (1, c_blk, hw_blk)  activation dtype
        # noise_ref: (1, 1,     hw_blk)  activation dtype (broadcasts over C)
        # w_ref:     (1, C,     1)       activation dtype; whole weight, DMA'd once
        if num_c_blocks == 1:
            w_blk = w_ref[...]                              # C == c_blk
        else:
            # num_c_blocks > 1 implies c_blk is a multiple of 8 (sublane-aligned).
            c_start = pl.multiple_of(pl.program_id(2) * c_blk, c_blk)
            w_blk = w_ref[:, pl.ds(c_start, c_blk), :]      # (1, c_blk, 1)
        o_ref[...] = img_ref[...] + w_blk * noise_ref[...]

    return kernel


def _pow2_divisor_block(dim, unit, cap):
    """Largest power-of-two multiple of `unit` dividing `dim`, capped; else full dim."""
    if dim % unit != 0:
        return dim  # full-dim block: legal under the (8,128) rule
    blk = unit
    while blk * 2 <= min(dim, cap) and dim % (blk * 2) == 0:
        blk *= 2
    return blk


def noise_injection(image, noise, weight, *, donate_image=False):
    """image: (N, C, H, W); noise: (N, 1, H, W); weight: (1, C, 1, 1)."""
    N, C, H, W = image.shape
    HW = H * W
    dtype = image.dtype
    itemsize = jnp.dtype(dtype).itemsize

    # Compute entirely in the activation dtype (bf16 stays packed; f32 is exact).
    img3 = image.reshape(N, C, HW)
    noi3 = noise.reshape(N, 1, HW).astype(dtype)
    w3 = weight.reshape(1, C, 1).astype(dtype)

    # --- block sizing ------------------------------------------------------
    # ~4 MiB image bytes per block: amortizes the ~0.35 us/step overhead to a
    # few percent even at v7x's 3.2 TB/s, while 2*(in+out) double-buffered
    # (~16 MiB) + noise/weight stays well inside a 32 MiB scoped VMEM limit
    # (v6e/v5e could go bigger, but 4 MiB is already >95% of roofline there).
    budget_bytes = 4 * 1024 * 1024
    min_sub = {1: 32, 2: 16, 4: 8}.get(itemsize, 8)  # dtype-aware sublane minimum

    hw_cap = max(128, budget_bytes // (min_sub * itemsize))
    hw_blk = _pow2_divisor_block(HW, 128, min(hw_cap, 16384))
    # TODO(synk): if HW % 128 != 0 is ever hot, pad HW to a multiple of 128 in
    # the wrapper instead of this full-HW fallback (avoids masked vst.msk).
    c_cap = max(min_sub, budget_bytes // (hw_blk * itemsize))
    c_blk = _pow2_divisor_block(C, min_sub, min(c_cap, 256))

    num_c_blocks = pl.cdiv(C, c_blk)
    num_hw_blocks = pl.cdiv(HW, hw_blk)
    # C innermost so the noise block index (n, 0, s) is constant across it.
    grid = (N, num_hw_blocks, num_c_blocks)

    cost = pl.CostEstimate(
        flops=2 * N * C * HW,  # one mul + one add per output element
        transcendentals=0,
        # image read + write, noise read once, weight read once.
        bytes_accessed=(2 * N * C * HW + N * HW + C) * itemsize,
    )

    kernel = _make_noise_injection_kernel(c_blk, num_c_blocks)

    out = pl.pallas_call(
        kernel,
        out_shape=jax.ShapeDtypeStruct((N, C, HW), dtype),
        grid_spec=pltpu.PrefetchScalarGridSpec(
            num_scalar_prefetch=0,
            grid=grid,
            in_specs=[
                pl.BlockSpec((1, c_blk, hw_blk), lambda n, s, c: (n, c, s)),
                pl.BlockSpec((1, 1, hw_blk), lambda n, s, c: (n, 0, s)),
                # Whole weight, constant block index -> fetched exactly once.
                pl.BlockSpec((1, C, 1), lambda n, s, c: (0, 0, 0)),
            ],
            out_specs=pl.BlockSpec((1, c_blk, hw_blk), lambda n, s, c: (n, c, s)),
        ),
        compiler_params=pltpu.CompilerParams(
            # All axes independent -> megacore-shardable on v7x.
            dimension_semantics=("parallel", "parallel", "parallel"),
            # ~16-17 MiB double-buffered working set; 32 MiB is safe on
            # v5e (raises its 16 MiB default), v6e, and v7x (64 MiB physical).
            vmem_limit_bytes=32 * 1024 * 1024,
        ),
        cost_estimate=cost,
        # Peak-memory-sensitive callers that truly donate `image` can alias the
        # output onto it; traffic is unchanged (the real win is fusing this add
        # into the producer conv's epilogue, which is out of scope here).
        input_output_aliases=({0: 0} if donate_image else {}),
    )(img3, noi3, w3)
    return out.reshape(N, C, H, W)


if __name__ == "__main__":
    N, C, H, W = 2, 4, 16, 16
    key = jax.random.PRNGKey(0)
    k_img, k_noise, k_w = jax.random.split(key, 3)

    image = jax.random.normal(k_img, (N, C, H, W), dtype=jnp.float32)
    noise = jax.random.normal(k_noise, (N, 1, H, W), dtype=jnp.float32)
    # Module __init__ uses zeros(1, C, 1, 1); use a non-zero weight so the
    # broadcast/multiply path is actually exercised.
    weight = jax.random.normal(k_w, (1, C, 1, 1), dtype=jnp.float32)

    out = noise_injection(image, noise, weight)
    out = jax.block_until_ready(out)

    ref = image + weight * noise
    assert out.shape == ref.shape
    assert jnp.allclose(out, ref, atol=1e-6, rtol=1e-6)
    print("KERNEL_OK")
</pallas_src>

<mosaic_0001>
module attributes {stable_mosaic.version = 11 : i64} {
  func.func @kernel(%arg0: i32, %arg1: i32, %arg2: i32, %arg3: memref<1x4x256xf32, #tpu.memory_space<vmem>>, %arg4: memref<1x1x256xf32, #tpu.memory_space<vmem>>, %arg5: memref<1x4x1xf32, #tpu.memory_space<vmem>>, %arg6: memref<1x4x256xf32, #tpu.memory_space<vmem>>) attributes {dimension_semantics = [#tpu.dimension_semantics<parallel>, #tpu.dimension_semantics<parallel>, #tpu.dimension_semantics<parallel>], iteration_bounds = array<i64: 2, 1, 1>, scalar_prefetch = 0 : i64, scratch_operands = 0 : i64, tpu.core_type = #tpu.core_type<tc>, window_params = [{transform_indices = @transform_0, window_bounds = array<i64: 1, 4, 256>}, {transform_indices = @transform_1, window_bounds = array<i64: 1, 1, 256>}, {pipeline_mode = #tpu.pipeline_mode<synchronous>, transform_indices = @transform_2, window_bounds = array<i64: 1, 4, 1>}, {transform_indices = @transform_3, window_bounds = array<i64: 1, 4, 256>}]} {
    %c0 = arith.constant 0 : index
    %c0_0 = arith.constant 0 : index
    %c0_1 = arith.constant 0 : index
    %0 = vector.load %arg5[%c0, %c0_0, %c0_1] : memref<1x4x1xf32, #tpu.memory_space<vmem>>, vector<1x4x1xf32>
    %c0_2 = arith.constant 0 : index
    %c0_3 = arith.constant 0 : index
    %c0_4 = arith.constant 0 : index
    %1 = vector.load %arg3[%c0_2, %c0_3, %c0_4] : memref<1x4x256xf32, #tpu.memory_space<vmem>>, vector<1x4x256xf32>
    %c0_5 = arith.constant 0 : index
    %c0_6 = arith.constant 0 : index
    %c0_7 = arith.constant 0 : index
    %2 = vector.load %arg4[%c0_5, %c0_6, %c0_7] : memref<1x1x256xf32, #tpu.memory_space<vmem>>, vector<1x1x256xf32>
    %3 = vector.broadcast %0 : vector<1x4x1xf32> to vector<1x4x256xf32>
    %4 = vector.broadcast %2 : vector<1x1x256xf32> to vector<1x4x256xf32>
    %5 = arith.mulf %3, %4 : vector<1x4x256xf32>
    %6 = arith.addf %1, %5 : vector<1x4x256xf32>
    %c0_8 = arith.constant 0 : index
    %c0_9 = arith.constant 0 : index
    %c0_10 = arith.constant 0 : index
    %7 = vector.load %arg6[%c0_8, %c0_9, %c0_10] : memref<1x4x256xf32, #tpu.memory_space<vmem>>, vector<1x4x256xf32>
    tpu.vector_store %arg6[%c0_8, %c0_9, %c0_10], %6 {strides = array<i32>} : memref<1x4x256xf32, #tpu.memory_space<vmem>>, vector<1x4x256xf32>,
    return
  }
  func.func @transform_0(%arg0: i32, %arg1: i32, %arg2: i32) -> (i32, i32, i32) {
    %c0_i32 = arith.constant 0 : i32
    return %arg0, %arg2, %arg1 : i32, i32, i32
  }
  func.func @transform_1(%arg0: i32, %arg1: i32, %arg2: i32) -> (i32, i32, i32) {
    %c0_i32 = arith.constant 0 : i32
    %c0_i32_0 = arith.constant 0 : i32
    return %arg0, %c0_i32, %arg1 : i32, i32, i32
  }
  func.func @transform_2(%arg0: i32, %arg1: i32, %arg2: i32) -> (i32, i32, i32) {
    %c0_i32 = arith.constant 0 : i32
    %c0_i32_0 = arith.constant 0 : i32
    %c0_i32_1 = arith.constant 0 : i32
    %c0_i32_2 = arith.constant 0 : i32
    return %c0_i32, %c0_i32_0, %c0_i32_1 : i32, i32, i32
  }
  func.func @transform_3(%arg0: i32, %arg1: i32, %arg2: i32) -> (i32, i32, i32) {
    %c0_i32 = arith.constant 0 : i32
    return %arg0, %arg2, %arg1 : i32, i32, i32
  }
}

</mosaic_0001>

<llo_original>
// kernel: tpu_custom_call.1
$region0: #{tpu_custom_call.1}
  #allocation0 [shape = 'u32[]', space=smem, size = 0x4, offset = 0x4, fixed_abs, tag = 'smem constant byte address 0x4 - core index']
  #allocation1 [shape = 'u32[144,128]{1,0:T(1,128)}', space=vmem, size = 0x12000, scoped, tag = 'internal scratch']
  %s0 = inlined_call_operand.hbm [shape: f32[2,4,256], index: 0, kind: input, shape index: {}]
  %s1 = inlined_call_operand.vmem [shape: f32[2,1,256], index: 1, kind: input, shape index: {}]
  %s2 = inlined_call_operand.vmem [shape: f32[1,4,1], index: 2, kind: input, shape index: {}]
  %s3 = inlined_call_operand.hbm [shape: f32[2,4,256], index: 3, kind: output, shape index: {}]
  %s4 = sld [smem:[#allocation0]]
  $region49: #{tpu_custom_call.1} parent=0
    _
  %s6 = ssub.s32 1, %s4
  %s7 = scalar_select 0, %s6, %s4
  $region1: #{tpu_custom_call.1} parent=0
    #allocation2 [shape = 'u8[8192]{0}', space=vmem, size = 0x2000, scoped, tag = 'input window, operand 0']
    #allocation3 [shape = 's32[2]{0}', space=sflag, size = 0x8, scoped, tag = 'scoped memory for tpu_custom_call.1']
    #allocation4 [shape = 's32[2]{0}', space=sflag, size = 0x8, scoped, tag = 'scoped memory for tpu_custom_call.1']
    #allocation5 [shape = 'u8[8192]{0}', space=vmem, size = 0x2000, scoped, tag = 'output window, operand 0']
    %8 = vsyncpa [#allocation3], 0
    %s9 = scalar_lea.sflag [#allocation3], 1
    %10 = vsyncpa %s9, 0
    %11 = vsyncpa [#allocation4], 0
    %s12 = scalar_lea.sflag [#allocation4], 1
    %13 = vsyncpa %s12, 0
    loop: start=0, step=1, limit=4
    $region2: #{tpu_custom_call.1} parent=1 // loop_pre_header
      _
    $region3: #{tpu_custom_call.1} parent=1 // loop_header
      %s15 = sphi 0, %s19
      %p16 = scmp.ge.s32.totalorder %s15, 4
      %s22 = sphi 0, %s41
      %s23 = sphi 0, %s37
      %s24 = sphi 0, %s33
      %s25 = sphi 0, %s22
      %s26 = sphi 0, %s23
      %s27 = sphi 0, %s24
      %s28 = sphi 0, %s25
      %s29 = sphi 0, %s26
      %s30 = sphi 0, %s27
      %s48 = sphi 0, %s50
      %s51 = sphi 0, %s48
      %s52 = sphi 0, %s51
      %s68 = sphi 0, %s52
      %s76 = sphi 0, %s78
      %s79 = sphi 0, %s76
      %s80 = sphi 0, %s79
      %s96 = sphi 0, %s80
      %s100 = sphi 0, %s100
      %s102 = sphi 0, %s100
      %s103 = sphi 0, %s102
      %s117 = sphi 0, %s103
      %s127 = sphi 0, %s129
      %s130 = sphi 0, %s127
      %s131 = sphi 0, %s130
      %s147 = sphi 0, %s131
    $region4: #{tpu_custom_call.1} parent=1 // loop_header_branch
      %18 = sbr.rel (%p16) target = $region8
    $region5: #{tpu_custom_call.1} parent=1 // loop_body
      %s20 = ssub.s32 %s15, 1
      %s21 = ssub.s32 %s15, 2
      %s31 = sadd.s32 1, %s24
      %p32 = scmp.ge.s32.totalorder %s31, 1
      %s33 = scalar_select %p32, 0, %s31
      %s34 = sadd.s32 1, %s23
      %s35 = scalar_select %p32, %s34, %s23
      %p36 = scmp.ge.s32.totalorder %s35, 1
      %s37 = scalar_select %p36, 0, %s35
      %s38 = sadd.s32 1, %s22
      %s39 = scalar_select %p36, %s38, %s22
      %p40 = scmp.ge.s32.totalorder %s39, 2
      %s41 = scalar_select %p40, 0, %s39
      %s42 = ssub.s32 %s22, %s41
      %s43 = ssub.s32 %s24, %s33
      %s44 = sor.u32 %s42, %s43
      %s45 = ssub.s32 %s23, %s37
      %s46 = sor.u32 %s44, %s45
      %p47 = scmp.eq.s32.totalorder %s46, 0
      %s49 = sadd.s32 %s48, 1
      %s50 = scalar_select %p47, %s48, %s49
      %p53 = pneg %p47
      %p54 = scmp.eq.s32.totalorder %s15, 1
      %p55 = por %p53, %p54
      %p56 = scmp.ne.s32.totalorder %s48, %s51
      %p57 = scmp.eq.s32.totalorder %s15, 0
      %p58 = por %p56, %p57
      %p59 = scmp.ne.s32.totalorder %s48, %s51
      %p60 = scmp.eq.s32.totalorder %s20, 1
      %p61 = por %p59, %p60
      %p62 = scmp.ne.s32.totalorder %s51, %s52
      %p63 = scmp.eq.s32.totalorder %s20, 0
      %p64 = por %p62, %p63
      %p65 = scmp.ne.s32.totalorder %s51, %s52
      %p66 = scmp.eq.s32.totalorder %s21, 1
      %p67 = por %p65, %p66
      %p69 = scmp.ne.s32.totalorder %s52, %s68
      %p70 = scmp.eq.s32.totalorder %s21, 0
      %p71 = por %p69, %p70
      %s72 = ssub.s32 %s22, %s41
      %s73 = ssub.s32 %s23, %s37
      %s74 = sor.u32 %s72, %s73
      %p75 = scmp.eq.s32.totalorder %s74, 0
      %s77 = sadd.s32 %s76, 1
      %s78 = scalar_select %p75, %s76, %s77
      %p81 = pneg %p75
      %p82 = scmp.eq.s32.totalorder %s15, 1
      %p83 = por %p81, %p82
      %p84 = scmp.ne.s32.totalorder %s76, %s79
      %p85 = scmp.eq.s32.totalorder %s15, 0
      %p86 = por %p84, %p85
      %p87 = scmp.ne.s32.totalorder %s76, %s79
      %p88 = scmp.eq.s32.totalorder %s20, 1
      %p89 = por %p87, %p88
      %p90 = scmp.ne.s32.totalorder %s79, %s80
      %p91 = scmp.eq.s32.totalorder %s20, 0
      %p92 = por %p90, %p91
      %p93 = scmp.ne.s32.totalorder %s79, %s80
      %p94 = scmp.eq.s32.totalorder %s21, 1
      %p95 = por %p93, %p94
      %p97 = scmp.ne.s32.totalorder %s80, %s96
      %p98 = scmp.eq.s32.totalorder %s21, 0
      %p99 = por %p97, %p98
      %s101 = sadd.s32 %s100, 1
      %p104 = scmp.eq.s32.totalorder %s15, 1
      %p105 = scmp.ne.s32.totalorder %s100, %s102
      %p106 = scmp.eq.s32.totalorder %s15, 0
      %p107 = por %p105, %p106
      %p108 = scmp.ne.s32.totalorder %s100, %s102
      %p109 = scmp.eq.s32.totalorder %s20, 1
      %p110 = por %p108, %p109
      %p111 = scmp.ne.s32.totalorder %s102, %s103
      %p112 = scmp.eq.s32.totalorder %s20, 0
      %p113 = por %p111, %p112
      %p114 = scmp.ne.s32.totalorder %s102, %s103
      %p115 = scmp.eq.s32.totalorder %s21, 1
      %p116 = por %p114, %p115
      %p118 = scmp.ne.s32.totalorder %s103, %s117
      %p119 = scmp.eq.s32.totalorder %s21, 0
      %p120 = por %p118, %p119
      %s121 = ssub.s32 %s22, %s41
      %s122 = ssub.s32 %s24, %s33
      %s123 = sor.u32 %s121, %s122
      %s124 = ssub.s32 %s23, %s37
      %s125 = sor.u32 %s123, %s124
      %p126 = scmp.eq.s32.totalorder %s125, 0
      %s128 = sadd.s32 %s127, 1
      %s129 = scalar_select %p126, %s127, %s128
      %p132 = pneg %p126
      %p133 = scmp.eq.s32.totalorder %s15, 1
      %p134 = por %p132, %p133
      %p135 = scmp.ne.s32.totalorder %s127, %s130
      %p136 = scmp.eq.s32.totalorder %s15, 0
      %p137 = por %p135, %p136
      %p138 = scmp.ne.s32.totalorder %s127, %s130
      %p139 = scmp.eq.s32.totalorder %s20, 1
      %p140 = por %p138, %p139
      %p141 = scmp.ne.s32.totalorder %s130, %s131
      %p142 = scmp.eq.s32.totalorder %s20, 0
      %p143 = por %p141, %p142
      %p144 = scmp.ne.s32.totalorder %s130, %s131
      %p145 = scmp.eq.s32.totalorder %s21, 1
      %p146 = por %p144, %p145
      %p148 = scmp.ne.s32.totalorder %s131, %s147
      %p149 = scmp.eq.s32.totalorder %s21, 0
      %p150 = por %p148, %p149
      %p151 = scmp.le.s32.totalorder 1, %s15
      %p152 = scmp.lt.s32.totalorder %s15, 3
      %p153 = pnand %p151, %p152
      %p154 = pneg %p153
      // Predicated region
      $region9: #{tpu_custom_call.1} parent=5 // pred_check
        _
      $region10: #{tpu_custom_call.1} parent=5 // pred_check_branch
        %156 = sbr.rel (%p153) target = $region12
      $region11: #{tpu_custom_call.1} parent=5 // pred_region
        %s157 = ssub.s32 %s15, 1
        // Predicated region
        $region13: #{tpu_custom_call.1} parent=11 // pred_check
          %p158 = pneg %p113
        $region14: #{tpu_custom_call.1} parent=11 // pred_check_branch
          %160 = sbr.rel (%p158) target = $region16
        $region15: #{tpu_custom_call.1} parent=11 // pred_region
          _
        $region16: #{tpu_custom_call.1} parent=11 // pred_fallthru
          _
      $region12: #{tpu_custom_call.1} parent=5 // pred_fallthru
        _
      %p161 = scmp.lt.s32.totalorder %s15, 2
      // Predicated region
      $region17: #{tpu_custom_call.1} parent=5 // pred_check
        %p162 = pneg %p161
      $region18: #{tpu_custom_call.1} parent=5 // pred_check_branch
        %164 = sbr.rel (%p162) target = $region20
      $region19: #{tpu_custom_call.1} parent=5 // pred_region
        // Predicated region
        $region21: #{tpu_custom_call.1} parent=19 // pred_check
          %p165 = pneg %p58
        $region22: #{tpu_custom_call.1} parent=19 // pred_check_branch
          %167 = sbr.rel (%p165) target = $region24
        $region23: #{tpu_custom_call.1} parent=19 // pred_region
          %s168 = sand.u32 %s48, 1
          %s169 = scalar_lea.sflag [#allocation3], %s168
          %s170 = sand.u32 %s48, 1
          %s171 = smul.addr %s170, 8
          %s172 = scalar_lea.vmem [#allocation2], %s171
          %s173 = smul.u32 2, %s23
          %s175 = ssub.s32 128, 128
          %176 = vsyncadd %s169, %s175
          %s177 = smul.addr %s24, 2
          %s178 = sadd.s32 %s173, %s177
          %s179 = smul.addr %s22, 2
          %s180 = sadd.s32 %s178, %s179
          %s181 = smul.addr %s180, 64
          %s182 = scalar_lea.hbm %s0, %s181
          %s184 = sshll.u32 %s172, 4
          %s185 = int_to_ptr.vmem [resolvable:$true] %s184
          %187 = dma.hbm_to_vmem [thread:$0]  %s182, 128, %s185, %s169
        $region24: #{tpu_custom_call.1} parent=19 // pred_fallthru
          _
        // Predicated region
        $region25: #{tpu_custom_call.1} parent=19 // pred_check
          %p188 = pneg %p86
        $region26: #{tpu_custom_call.1} parent=19 // pred_check_branch
          %190 = sbr.rel (%p188) target = $region28
        $region27: #{tpu_custom_call.1} parent=19 // pred_region
          %s191 = smul.u32 2, %s23
          %p192 = scmp.lt.s32.totalorder %s22, 1
          %s193 = scalar_select %p192, %s22, 1
          %p194 = scmp.lt.s32.totalorder %s191, 1
          %s195 = scalar_select %p194, %s191, 1
          %s196 = smul.addr %s193, 2
          %s197 = sadd.s32 %s195, %s196
          %s198 = scalar_lea.vmem %s1, %s197
          %s199 = smul.u32 2, %s23
        $region28: #{tpu_custom_call.1} parent=19 // pred_fallthru
          _
      $region20: #{tpu_custom_call.1} parent=5 // pred_fallthru
        _
      %p200 = scmp.le.s32.totalorder 1, %s15
      %p201 = scmp.lt.s32.totalorder %s15, 3
      %p202 = pnand %p200, %p201
      %p203 = pneg %p202
      // Predicated region
      $region29: #{tpu_custom_call.1} parent=5 // pred_check
        _
      $region30: #{tpu_custom_call.1} parent=5 // pred_check_branch
        %205 = sbr.rel (%p202) target = $region32
      $region31: #{tpu_custom_call.1} parent=5 // pred_region
        %s206 = ssub.s32 %s15, 1
        %s207 = sand.u32 %s51, 1
        %s208 = scalar_lea.sflag [#allocation3], %s207
        %s209 = sand.u32 %s51, 1
        %s210 = smul.addr %s209, 8
        %s211 = scalar_lea.vmem [#allocation2], %s210
        // Predicated region
        $region33: #{tpu_custom_call.1} parent=31 // pred_check
          %p212 = pneg %p64
        $region34: #{tpu_custom_call.1} parent=31 // pred_check_branch
          %214 = sbr.rel (%p212) target = $region36
        $region35: #{tpu_custom_call.1} parent=31 // pred_region
          %215 = dma.done %s208, 128
        $region36: #{tpu_custom_call.1} parent=31 // pred_fallthru
          _
        %s216 = sand.u32 %s51, 1
        %s217 = scalar_lea.sflag [#allocation3], %s216
        %s218 = sand.u32 %s51, 1
        %s219 = smul.addr %s218, 8
        %s220 = scalar_lea.vmem [#allocation2], %s219
        %p221 = pneg %p64
        %p222 = pneg %p61
        %s223 = smul.u32 2, %s26
        %p224 = scmp.lt.s32.totalorder %s25, 1
        %s225 = scalar_select %p224, %s25, 1
        %p226 = scmp.lt.s32.totalorder %s223, 1
        %s227 = scalar_select %p226, %s223, 1
        %s228 = smul.addr %s225, 2
        %s229 = sadd.s32 %s227, %s228
        %s230 = scalar_lea.vmem %s1, %s229
        %p231 = pneg %p92
        %p232 = pneg %p89
        %p233 = pneg %p113
        %p234 = pneg %p110
        %p235 = pneg %p143
        %p236 = pneg %p140
        %s237 = sand.u32 %s130, 1
        %s238 = scalar_lea.sflag [#allocation4], %s237
        %s239 = sand.u32 %s130, 1
        %s240 = smul.addr %s239, 8
        %s241 = scalar_lea.vmem [#allocation5], %s240
        %s242 = smul.u32 2, %s26
        %s243 = smul.u32 2, %s26
        %p244 = scmp.lt.s32.totalorder %s25, 1
        %s245 = scalar_select %p244, %s25, 1
        %p246 = scmp.lt.s32.totalorder %s243, 1
        %s247 = scalar_select %p246, %s243, 1
        %s248 = smul.addr %s245, 2
        %s249 = sadd.s32 %s247, %s248
        %s250 = scalar_lea.vmem %s1, %s249
        %s251 = smul.u32 2, %s26
        %s252 = smul.u32 2, %s26
        %v253 = vld [vmem:[%s2] sm:$0xf]
        %v254 = vld [vmem:[%s211] sm:$0xff]
        %v255 = vld [vmem:[%s250] sm:$0x3]
        %257 = vset.pattern.permute.xlu0 0
        %258 = vperm.xlu0 %257, %v253
        %v259 = vpop.permute.xlu0 %258
        %v262 = vlaneseq
        %v263 = vshrl.u32 %v262, 7
        %v264 = vsub.s32 0, %v263
        %v265 = vrot.slane %v255, %v264
        %v266 = vlaneseq
        %v267 = vshrl.u32 %v266, 7
        %v268 = vsub.s32 1, %v267
        %v269 = vrot.slane %v255, %v268
        %v272 = vmul.f32 %v259, %v265
        %v273 = vmul.f32 %v259, %v269
        %v276 = vcombine.low %v272, %v273
        %v278 = vadd.f32 %v254, %v276
        %279 = vst [vmem:[%s241] sm:$0xff] %v278
        %s280 = sand.u32 %s130, 1
        %s281 = scalar_lea.sflag [#allocation4], %s280
        %s282 = sand.u32 %s130, 1
        %s283 = smul.addr %s282, 8
        %s284 = scalar_lea.vmem [#allocation5], %s283
        // Predicated region
        $region37: #{tpu_custom_call.1} parent=31 // pred_check
          %p285 = pneg %p140
        $region38: #{tpu_custom_call.1} parent=31 // pred_check_branch
          %287 = sbr.rel (%p285) target = $region40
        $region39: #{tpu_custom_call.1} parent=31 // pred_region
          %s288 = smul.u32 2, %s26
          %s290 = ssub.s32 128, 128
          %291 = vsyncadd %s281, %s290
          %s292 = smul.addr %s27, 2
          %s293 = sadd.s32 %s288, %s292
          %s294 = smul.addr %s25, 2
          %s295 = sadd.s32 %s293, %s294
          %s296 = smul.addr %s295, 64
          %s297 = scalar_lea.hbm %s3, %s296
          %s299 = sshll.u32 %s284, 4
          %s300 = int_to_ptr.vmem [resolvable:$true] %s299
          %302 = dma.vmem_to_hbm [thread:$0]  %s300, 128, %s297, %s281
        $region40: #{tpu_custom_call.1} parent=31 // pred_fallthru
          _
      $region32: #{tpu_custom_call.1} parent=5 // pred_fallthru
        _
      %p303 = scmp.le.s32.totalorder 2, %s15
      // Predicated region
      $region41: #{tpu_custom_call.1} parent=5 // pred_check
        %p304 = pneg %p303
      $region42: #{tpu_custom_call.1} parent=5 // pred_check_branch
        %306 = sbr.rel (%p304) target = $region44
      $region43: #{tpu_custom_call.1} parent=5 // pred_region
        %s307 = ssub.s32 %s15, 2
        // Predicated region
        $region45: #{tpu_custom_call.1} parent=43 // pred_check
          %p308 = pneg %p146
        $region46: #{tpu_custom_call.1} parent=43 // pred_check_branch
          %310 = sbr.rel (%p308) target = $region48
        $region47: #{tpu_custom_call.1} parent=43 // pred_region
          %s311 = sand.u32 %s131, 1
          %s312 = scalar_lea.sflag [#allocation4], %s311
          %s313 = sand.u32 %s131, 1
          %s314 = smul.addr %s313, 8
          %s315 = scalar_lea.vmem [#allocation5], %s314
          %316 = dma.done %s312, 128
        $region48: #{tpu_custom_call.1} parent=43 // pred_fallthru
          _
      $region44: #{tpu_custom_call.1} parent=5 // pred_fallthru
        _
    $region6: #{tpu_custom_call.1} parent=1 // loop_footer
      %s19 = sadd.s32 1, %s15
    $region7: #{tpu_custom_call.1} parent=1 // loop_footer_branch
      %14 = sbr.rel target = $region3
    $region8: #{tpu_custom_call.1} parent=1 // loop_exit
      _
    %317 = vsyncpa [#allocation3], 1
    %s318 = scalar_lea.sflag [#allocation3], 1
    %319 = vsyncpa %s318, 1
    %320 = vsyncpa [#allocation4], 1
    %s321 = scalar_lea.sflag [#allocation4], 1
    %322 = vsyncpa %s321, 1

</llo_original>
